<compile_context>
chip_gen: v7x
topology: tpu7x:2x2x1
jax: 0.10.0
libtpu: 0.0.40
codegen_flags: <defaults>
</compile_context>

<pallas_src>
import functools

import jax
import jax.numpy as jnp
from jax.experimental import pallas as pl
from jax.experimental.pallas import tpu as pltpu


def _stats_pool_kernel(x_ref, mean_ref, std_ref, shift_ref, sum_ref, sumsq_ref,
                       *, t_total, t_block, needs_mask):
    """x_ref: (rb, tT) tile. mean/std: (rb, 1). scratch: (rb, 1) f32 x3."""
    k = pl.program_id(1)
    nk = pl.num_programs(1)

    x = x_ref[...].astype(jnp.float32)                     # (rb, tT)

    @pl.when(k == 0)
    def _init():
        # Per-row shift (first time sample) for numerically stable accumulation.
        shift_ref[...] = x[:, 0:1]
        sum_ref[...] = jnp.zeros_like(sum_ref)
        sumsq_ref[...] = jnp.zeros_like(sumsq_ref)

    d = x - shift_ref[...]                                 # (rb, tT)

    def _accumulate(vals):
        sum_ref[...] += jnp.sum(vals, axis=-1, keepdims=True)
        sumsq_ref[...] += jnp.sum(vals * vals, axis=-1, keepdims=True)

    if needs_mask:
        # Only the final (partial) T block pays for masking.
        @pl.when(k < nk - 1)
        def _interior():
            _accumulate(d)

        @pl.when(k == nk - 1)
        def _tail():
            # Scalar threshold = number of valid columns in the final block.
            thresh = t_total - k * t_block
            col = jax.lax.broadcasted_iota(jnp.int32, d.shape, dimension=1)
            _accumulate(jnp.where(col < thresh, d, 0.0))
    else:
        _accumulate(d)

    @pl.when(k == nk - 1)
    def _finalize():
        n = jnp.float32(t_total)
        s = sum_ref[...]
        mean = shift_ref[...] + s / n
        # Unbiased variance (ddof=1); 0/0 -> NaN for T == 1 (torch.std parity).
        var = (sumsq_ref[...] - s * s / n) / jnp.float32(t_total - 1)
        var = jnp.maximum(var, 0.0)          # clamp rounding; NaN propagates
        mean_ref[...] = mean.astype(mean_ref.dtype)
        std_ref[...] = jnp.sqrt(var).astype(std_ref.dtype)


def _divisors(n):
    ds, i = set(), 1
    while i * i <= n:
        if n % i == 0:
            ds.add(i)
            ds.add(n // i)
        i += 1
    return sorted(ds)


def _vmem_budgets():
    """Generation-aware (per input-buffer budget, vmem_limit_bytes)."""
    try:
        cap = int(pltpu.get_tpu_info().vmem_capacity_bytes)
    except Exception:
        cap = 64 * 1024 * 1024           # conservative: v7x per-TensorCore VMEM
    vmem_limit = min(cap // 2, 64 * 1024 * 1024)   # 64 MiB v5e/v6e, 32 MiB v7x
    per_buffer = vmem_limit // 4                    # room for 2-3 in-flight tiles
    return per_buffer, vmem_limit


def _choose_row_block(rows, t, itemsize, budget):
    """Largest row block that obeys the (8,128) sublane rule, divides rows,
    fits the budget at the minimum time tile, and preferably leaves >= 2 row
    blocks so the parallel grid axis can shard across TensorCores."""
    valid = [d for d in _divisors(rows) if d % 8 == 0 or d == rows]
    min_tt = t if t <= 128 else 128
    fitting = [d for d in valid if d * min_tt * itemsize <= budget]
    if not fitting:
        return min(valid)
    split = [d for d in fitting if rows // d >= 2]
    pool = split if split else fitting
    return max(pool)


def _choose_t_block(t, rb, itemsize, budget):
    """Full extent if it fits, else a balanced multiple of 128 within budget."""
    max_tt = budget // max(1, rb * itemsize)
    if t <= max_tt:
        return t
    max_tt = max(128, (max_tt // 128) * 128)
    n_blocks = pl.cdiv(t, max_tt)
    return ((pl.cdiv(t, n_blocks) + 127) // 128) * 128


def stats_pool(x, *, t_block=None):
    """x: (B, C, T) -> (B, 2C) = concat([mean_T, std_T(ddof=1)], axis=1)."""
    b, c, t = x.shape
    rows = b * c
    itemsize = x.dtype.itemsize
    per_buffer_budget, vmem_limit = _vmem_budgets()

    rb = _choose_row_block(rows, t, itemsize, per_buffer_budget)
    if t_block is None:
        t_block = _choose_t_block(t, rb, itemsize, per_buffer_budget)
    num_t_blocks = pl.cdiv(t, t_block)

    kernel = functools.partial(
        _stats_pool_kernel,
        t_total=t,
        t_block=t_block,
        needs_mask=(t % t_block) != 0,
    )

    x2d = x.reshape(rows, t)                         # contiguous, free reshape
    out_dtype = x.dtype
    in_map = lambda i, k: (i, k)
    out_spec = pl.BlockSpec((rb, 1), lambda i, k: (i, 0))

    def _call(in_spec):
        return pl.pallas_call(
            kernel,
            out_shape=(jax.ShapeDtypeStruct((rows, 1), out_dtype),
                       jax.ShapeDtypeStruct((rows, 1), out_dtype)),
            grid_spec=pltpu.PrefetchScalarGridSpec(
                num_scalar_prefetch=0,
                grid=(rows // rb, num_t_blocks),      # reduction axis last
                in_specs=[in_spec],
                out_specs=[out_spec, out_spec],
                scratch_shapes=[
                    pltpu.VMEM((rb, 1), jnp.float32),  # per-row shift
                    pltpu.VMEM((rb, 1), jnp.float32),  # running (shifted) sum
                    pltpu.VMEM((rb, 1), jnp.float32),  # running (shifted) sumsq
                ],
            ),
            compiler_params=pltpu.CompilerParams(
                dimension_semantics=("parallel", "arbitrary"),
                vmem_limit_bytes=vmem_limit,
            ),
        )(x2d)

    # Pure streaming kernel: for many small steps, 3-deep input buffering hides
    # DMA issue latency; fall back to default double buffering if unsupported.
    specs = []
    tile_bytes = rb * t_block * itemsize
    if num_t_blocks >= 2 and tile_bytes < (2 << 20):
        try:
            specs.append(pl.BlockSpec((rb, t_block), in_map,
                                      pipeline_mode=pl.Buffered(3)))
        except TypeError:
            pass
    specs.append(pl.BlockSpec((rb, t_block), in_map))

    mean = std = None
    err = None
    for spec in specs:
        try:
            mean, std = _call(spec)
            break
        except Exception as e:  # fall back to plain double-buffered BlockSpec
            mean = std = None
            err = e
    if mean is None:
        raise err

    mean = mean.reshape(b, c)
    std = std.reshape(b, c)
    return jnp.concatenate([mean, std], axis=1)


def stats_pool_ref(x):
    # Pure-JAX reference mirroring the PyTorch module.
    xt = jnp.transpose(x, (0, 2, 1))            # (B, T, C)
    means = jnp.mean(xt, axis=1)
    stds = jnp.std(xt, axis=1, ddof=1)          # torch.std is unbiased
    return jnp.concatenate([means, stds], axis=1)


if __name__ == "__main__":
    key = jax.random.PRNGKey(0)

    # Primary small-shape check: (batch, channels, time).
    B, C, T = 2, 4, 16
    x = jax.random.normal(key, (B, C, T), dtype=jnp.float32)
    out = jax.block_until_ready(stats_pool(x))
    ref = stats_pool_ref(x)
    assert out.shape == (B, 2 * C), out.shape
    assert jnp.allclose(out, ref, atol=1e-5, rtol=1e-5), (out, ref)

    # Multi-block T accumulation path (even split).
    x2 = jax.random.normal(jax.random.PRNGKey(1), (2, 4, 256), dtype=jnp.float32)
    out2 = jax.block_until_ready(stats_pool(x2, t_block=128))
    assert jnp.allclose(out2, stats_pool_ref(x2), atol=1e-5, rtol=1e-5)

    # Masked (uneven) last T block + large mean offset (numerical stability).
    x3 = jax.random.normal(jax.random.PRNGKey(2), (3, 4, 320),
                           dtype=jnp.float32) + 100.0
    out3 = jax.block_until_ready(stats_pool(x3, t_block=128))
    assert jnp.allclose(out3, stats_pool_ref(x3), atol=1e-4, rtol=1e-4)

    print("KERNEL_OK")
</pallas_src>

<mosaic_0001>
module attributes {stable_mosaic.version = 11 : i64} {
  func.func @_stats_pool_kernel(%arg0: i32, %arg1: i32, %arg2: memref<8x16xf32, #tpu.memory_space<vmem>>, %arg3: memref<8x1xf32, #tpu.memory_space<vmem>>, %arg4: memref<8x1xf32, #tpu.memory_space<vmem>>, %arg5: memref<8x1xf32, #tpu.memory_space<vmem>>, %arg6: memref<8x1xf32, #tpu.memory_space<vmem>>, %arg7: memref<8x1xf32, #tpu.memory_space<vmem>>) attributes {dimension_semantics = [#tpu.dimension_semantics<parallel>, #tpu.dimension_semantics<arbitrary>], iteration_bounds = array<i64: 1, 1>, scalar_prefetch = 0 : i64, scratch_operands = 3 : i64, tpu.core_type = #tpu.core_type<tc>, window_params = [{transform_indices = @transform_0, window_bounds = array<i64: 8, 16>}, {transform_indices = @transform_1, window_bounds = array<i64: 8, 1>}, {transform_indices = @transform_2, window_bounds = array<i64: 8, 1>}]} {
    %c0 = arith.constant 0 : index
    %c0_0 = arith.constant 0 : index
    %0 = vector.load %arg2[%c0, %c0_0] : memref<8x16xf32, #tpu.memory_space<vmem>>, vector<8x16xf32>
    %c0_i32 = arith.constant 0 : i32
    %1 = arith.cmpi eq, %arg1, %c0_i32 : i32
    %2 = arith.extui %1 : i1 to i32
    %c0_i32_1 = arith.constant 0 : i32
    %3 = arith.cmpi ne, %2, %c0_i32_1 : i32
    scf.if %3 {
      %21 = vector.extract_strided_slice %0 {offsets = [0, 0], sizes = [8, 1], strides = [1, 1]} : vector<8x16xf32> to vector<8x1xf32>
      %c0_15 = arith.constant 0 : index
      %c0_16 = arith.constant 0 : index
      %22 = vector.load %arg5[%c0_15, %c0_16] : memref<8x1xf32, #tpu.memory_space<vmem>>, vector<8x1xf32>
      tpu.vector_store %arg5[%c0_15, %c0_16], %21 {strides = array<i32>} : memref<8x1xf32, #tpu.memory_space<vmem>>, vector<8x1xf32>,
      %cst_17 = arith.constant 0.000000e+00 : f32
      %23 = vector.broadcast %cst_17 : f32 to vector<8x1xf32>
      %c0_18 = arith.constant 0 : index
      %c0_19 = arith.constant 0 : index
      %24 = vector.load %arg6[%c0_18, %c0_19] : memref<8x1xf32, #tpu.memory_space<vmem>>, vector<8x1xf32>
      tpu.vector_store %arg6[%c0_18, %c0_19], %23 {strides = array<i32>} : memref<8x1xf32, #tpu.memory_space<vmem>>, vector<8x1xf32>,
      %cst_20 = arith.constant 0.000000e+00 : f32
      %25 = vector.broadcast %cst_20 : f32 to vector<8x1xf32>
      %c0_21 = arith.constant 0 : index
      %c0_22 = arith.constant 0 : index
      %26 = vector.load %arg7[%c0_21, %c0_22] : memref<8x1xf32, #tpu.memory_space<vmem>>, vector<8x1xf32>
      tpu.vector_store %arg7[%c0_21, %c0_22], %25 {strides = array<i32>} : memref<8x1xf32, #tpu.memory_space<vmem>>, vector<8x1xf32>,
    } else {
    }
    %c0_2 = arith.constant 0 : index
    %c0_3 = arith.constant 0 : index
    %4 = vector.load %arg5[%c0_2, %c0_3] : memref<8x1xf32, #tpu.memory_space<vmem>>, vector<8x1xf32>
    %5 = vector.broadcast %4 : vector<8x1xf32> to vector<8x16xf32>
    %6 = arith.subf %0, %5 : vector<8x16xf32>
    %c0_4 = arith.constant 0 : index
    %c0_5 = arith.constant 0 : index
    %7 = vector.load %arg6[%c0_4, %c0_5] : memref<8x1xf32, #tpu.memory_space<vmem>>, vector<8x1xf32>
    %cst = arith.constant dense<0.000000e+00> : vector<8xf32>
    %8 = vector.multi_reduction <add>, %6, %cst [1] : vector<8x16xf32> to vector<8xf32>
    %9 = vector.shape_cast %8 : vector<8xf32> to vector<8x1xf32>
    %10 = arith.addf %7, %9 : vector<8x1xf32>
    %c0_6 = arith.constant 0 : index
    %c0_7 = arith.constant 0 : index
    %11 = vector.load %arg6[%c0_6, %c0_7] : memref<8x1xf32, #tpu.memory_space<vmem>>, vector<8x1xf32>
    tpu.vector_store %arg6[%c0_6, %c0_7], %10 {strides = array<i32>} : memref<8x1xf32, #tpu.memory_space<vmem>>, vector<8x1xf32>,
    %c0_8 = arith.constant 0 : index
    %c0_9 = arith.constant 0 : index
    %12 = vector.load %arg7[%c0_8, %c0_9] : memref<8x1xf32, #tpu.memory_space<vmem>>, vector<8x1xf32>
    %13 = arith.mulf %6, %6 : vector<8x16xf32>
    %cst_10 = arith.constant dense<0.000000e+00> : vector<8xf32>
    %14 = vector.multi_reduction <add>, %13, %cst_10 [1] : vector<8x16xf32> to vector<8xf32>
    %15 = vector.shape_cast %14 : vector<8xf32> to vector<8x1xf32>
    %16 = arith.addf %12, %15 : vector<8x1xf32>
    %c0_11 = arith.constant 0 : index
    %c0_12 = arith.constant 0 : index
    %17 = vector.load %arg7[%c0_11, %c0_12] : memref<8x1xf32, #tpu.memory_space<vmem>>, vector<8x1xf32>
    tpu.vector_store %arg7[%c0_11, %c0_12], %16 {strides = array<i32>} : memref<8x1xf32, #tpu.memory_space<vmem>>, vector<8x1xf32>,
    %c0_i32_13 = arith.constant 0 : i32
    %18 = arith.cmpi eq, %arg1, %c0_i32_13 : i32
    %19 = arith.extui %18 : i1 to i32
    %c0_i32_14 = arith.constant 0 : i32
    %20 = arith.cmpi ne, %19, %c0_i32_14 : i32
    scf.if %20 {
      %c0_15 = arith.constant 0 : index
      %c0_16 = arith.constant 0 : index
      %21 = vector.load %arg6[%c0_15, %c0_16] : memref<8x1xf32, #tpu.memory_space<vmem>>, vector<8x1xf32>
      %c0_17 = arith.constant 0 : index
      %c0_18 = arith.constant 0 : index
      %22 = vector.load %arg5[%c0_17, %c0_18] : memref<8x1xf32, #tpu.memory_space<vmem>>, vector<8x1xf32>
      %cst_19 = arith.constant 1.600000e+01 : f32
      %23 = vector.broadcast %cst_19 : f32 to vector<8x1xf32>
      %24 = arith.divf %21, %23 : vector<8x1xf32>
      %25 = arith.addf %22, %24 : vector<8x1xf32>
      %c0_20 = arith.constant 0 : index
      %c0_21 = arith.constant 0 : index
      %26 = vector.load %arg7[%c0_20, %c0_21] : memref<8x1xf32, #tpu.memory_space<vmem>>, vector<8x1xf32>
      %27 = arith.mulf %21, %21 : vector<8x1xf32>
      %cst_22 = arith.constant 1.600000e+01 : f32
      %28 = vector.broadcast %cst_22 : f32 to vector<8x1xf32>
      %29 = arith.divf %27, %28 : vector<8x1xf32>
      %30 = arith.subf %26, %29 : vector<8x1xf32>
      %cst_23 = arith.constant 1.500000e+01 : f32
      %31 = vector.broadcast %cst_23 : f32 to vector<8x1xf32>
      %32 = arith.divf %30, %31 : vector<8x1xf32>
      %cst_24 = arith.constant 0.000000e+00 : f32
      %33 = vector.broadcast %cst_24 : f32 to vector<8x1xf32>
      %34 = arith.maximumf %32, %33 : vector<8x1xf32>
      %c0_25 = arith.constant 0 : index
      %c0_26 = arith.constant 0 : index
      %35 = vector.load %arg3[%c0_25, %c0_26] : memref<8x1xf32, #tpu.memory_space<vmem>>, vector<8x1xf32>
      tpu.vector_store %arg3[%c0_25, %c0_26], %25 {strides = array<i32>} : memref<8x1xf32, #tpu.memory_space<vmem>>, vector<8x1xf32>,
      %36 = math.sqrt %34 : vector<8x1xf32>
      %c0_27 = arith.constant 0 : index
      %c0_28 = arith.constant 0 : index
      %37 = vector.load %arg4[%c0_27, %c0_28] : memref<8x1xf32, #tpu.memory_space<vmem>>, vector<8x1xf32>
      tpu.vector_store %arg4[%c0_27, %c0_28], %36 {strides = array<i32>} : memref<8x1xf32, #tpu.memory_space<vmem>>, vector<8x1xf32>,
    } else {
    }
    return
  }
  func.func @transform_0(%arg0: i32, %arg1: i32) -> (i32, i32) {
    %c0_i32 = arith.constant 0 : i32
    return %arg0, %arg1 : i32, i32
  }
  func.func @transform_1(%arg0: i32, %arg1: i32) -> (i32, i32) {
    %c0_i32 = arith.constant 0 : i32
    %c0_i32_0 = arith.constant 0 : i32
    return %arg0, %c0_i32 : i32, i32
  }
  func.func @transform_2(%arg0: i32, %arg1: i32) -> (i32, i32) {
    %c0_i32 = arith.constant 0 : i32
    %c0_i32_0 = arith.constant 0 : i32
    return %arg0, %c0_i32 : i32, i32
  }
}

</mosaic_0001>

<llo_original>
// kernel: tpu_custom_call.1
$region0: #{tpu_custom_call.1}
  #allocation0 [shape = 'u32[]', space=smem, size = 0x4, offset = 0x4, fixed_abs, tag = 'smem constant byte address 0x4 - core index']
  #allocation1 [shape = 'u32[144,128]{1,0:T(1,128)}', space=vmem, size = 0x12000, scoped, tag = 'internal scratch']
  #allocation2 [shape = 'f32[8,1]{1,0:T(8,128)}', space=vmem, size = 0x1000, scoped, tag = 'scratch operand']
  #allocation3 [shape = 'f32[8,1]{1,0:T(8,128)}', space=vmem, size = 0x1000, scoped, tag = 'scratch operand']
  #allocation4 [shape = 'f32[8,1]{1,0:T(8,128)}', space=vmem, size = 0x1000, scoped, tag = 'scratch operand']
  %s0 = inlined_call_operand.hbm [shape: f32[8,16], index: 0, kind: input, shape index: {}]
  %s1 = inlined_call_operand.vmem [shape: f32[8,1], index: 1, kind: output, shape index: {0}]
  %s2 = inlined_call_operand.vmem [shape: f32[8,1], index: 2, kind: output, shape index: {1}]
  %3 = xla_tuple %s1, %s2
  %s4 = sld [smem:[#allocation0]]
  $region34: #{tpu_custom_call.1} parent=0
    _
  %s6 = ssub.s32 1, %s4
  %s7 = scalar_select 0, %s6, %s4
  $region1: #{tpu_custom_call.1} parent=0
    #allocation5 [shape = 'u8[4096]{0}', space=vmem, size = 0x1000, scoped, tag = 'input window, operand 0, single buffered']
    #allocation6 [shape = 's32[1]{0}', space=sflag, size = 0x4, scoped, tag = 'scoped memory for tpu_custom_call.1']
    %8 = vsyncpa [#allocation6], 0
    // Predicated region
    $region2: #{tpu_custom_call.1} parent=1 // pred_check
      _
    $region3: #{tpu_custom_call.1} parent=1 // pred_check_branch
      %10 = sbr.rel (0) target = $region5
    $region4: #{tpu_custom_call.1} parent=1 // pred_region
      %s12 = ssub.s32 128, 128
      %13 = vsyncadd [#allocation6], %s12
      %s15 = sshll.u32 [#allocation5], 4
      %s16 = int_to_ptr.vmem [resolvable:$true] %s15
      %18 = dma.hbm_to_vmem [thread:$0]  %s0, 128, %s16, [#allocation6]
    $region5: #{tpu_custom_call.1} parent=1 // pred_fallthru
      _
    // Predicated region
    $region6: #{tpu_custom_call.1} parent=1 // pred_check
      _
    $region7: #{tpu_custom_call.1} parent=1 // pred_check_branch
      %20 = sbr.rel (0) target = $region9
    $region8: #{tpu_custom_call.1} parent=1 // pred_region
      %21 = dma.done [#allocation6], 128
    $region9: #{tpu_custom_call.1} parent=1 // pred_fallthru
      _
    %v22 = vld [vmem:[#allocation5] sm:$0xff]
    %p23 = scmp.eq.s32.totalorder 0, 0
    // Predicated region
    $region10: #{tpu_custom_call.1} parent=1 // pred_check
      %p24 = pneg %p23
    $region11: #{tpu_custom_call.1} parent=1 // pred_check_branch
      %26 = sbr.rel (%p24) target = $region13
    $region12: #{tpu_custom_call.1} parent=1 // pred_region
      %vm27 = vcmask 7168
      %28 = vst.msk [vmem:[#allocation2] sm:$0xff] %vm27, %v22
      %29 = vst.msk [vmem:[#allocation3] sm:$0xff] %vm27, 0.0
      %30 = vst.msk [vmem:[#allocation4] sm:$0xff] %vm27, 0.0
    $region13: #{tpu_custom_call.1} parent=1 // pred_fallthru
      _
    %v31 = vld [vmem:[#allocation2] sm:$0xff]
    %33 = vset.pattern.permute.xlu0 0
    %34 = vperm.xlu0 %33, %v31
    %v35 = vpop.permute.xlu0 %34
    %v37 = vsub.f32 %v22, %v35
    %v38 = vld [vmem:[#allocation3] sm:$0xff]
    %vm39 = vcmask 130048
    %v40 = vsel %vm39, %v37, 0.0
    %41 = vadd.xlane.f32.xlu0 %v40
    %v42 = vpop.xlane.xlu0 %41
    %v43 = vadd.f32 %v38, %v42
    %vm44 = vcmask 7168
    %45 = vst.msk [vmem:[#allocation3] sm:$0xff] %vm44, %v43
    %v46 = vld [vmem:[#allocation4] sm:$0xff]
    %v47 = vmul.f32 %v37, %v37
    %v48 = vsel %vm39, %v47, 0.0
    %49 = vadd.xlane.f32.xlu0 %v48
    %v50 = vpop.xlane.xlu0 %49
    %v51 = vadd.f32 %v46, %v50
    %52 = vst.msk [vmem:[#allocation4] sm:$0xff] %vm44, %v51
    // Predicated region
    $region14: #{tpu_custom_call.1} parent=1 // pred_check
      %p53 = pneg %p23
    $region15: #{tpu_custom_call.1} parent=1 // pred_check_branch
      %55 = sbr.rel (%p53) target = $region17
    $region16: #{tpu_custom_call.1} parent=1 // pred_region
      %v56 = vld [vmem:[#allocation3] sm:$0xff]
      %v57 = vld [vmem:[#allocation2] sm:$0xff]
      %v58 = vrcp.pop 16.0
      %v59 = vmul.f32 %v56, %v58
      %v60 = vadd.f32 %v57, %v59
      %v61 = vld [vmem:[#allocation4] sm:$0xff]
      %v62 = vmul.f32 %v56, %v56
      %v63 = vmul.f32 %v62, %v58
      %v64 = vsub.f32 %v61, %v63
      %v65 = vrcp.pop 15.0
      %v66 = vmul.f32 %v64, %v65
      %v67 = vmax.f32 %v66, 0.0
      %68 = vst.msk [vmem:[%s1] sm:$0xff] %vm44, %v60
      %v69 = vrsqrt.pop %v67
      %v70 = vmul.f32 %v67, %v69
      %vm71 = vcmp.eq.f32.partialorder %v67, inf
      %v72 = vsel %vm71, %v67, %v70
      %vm73 = vcmp.eq.f32.partialorder %v67, 0.0
      %v74 = vand.u32 %v67, 2147483648
      %v75 = vsel %vm73, %v74, %v72
      %76 = vst.msk [vmem:[%s2] sm:$0xff] %vm44, %v75
    $region17: #{tpu_custom_call.1} parent=1 // pred_fallthru
      _
    // Predicated region
    $region18: #{tpu_custom_call.1} parent=1 // pred_check
      _
    $region19: #{tpu_custom_call.1} parent=1 // pred_check_branch
      %78 = sbr.rel (0) target = $region21
    $region20: #{tpu_custom_call.1} parent=1 // pred_region
      _
    $region21: #{tpu_custom_call.1} parent=1 // pred_fallthru
      _
    // Predicated region
    $region22: #{tpu_custom_call.1} parent=1 // pred_check
      _
    $region23: #{tpu_custom_call.1} parent=1 // pred_check_branch
      %80 = sbr.rel (0) target = $region25
    $region24: #{tpu_custom_call.1} parent=1 // pred_region
      _
    $region25: #{tpu_custom_call.1} parent=1 // pred_fallthru
      _
    // Predicated region
    $region26: #{tpu_custom_call.1} parent=1 // pred_check
      _
    $region27: #{tpu_custom_call.1} parent=1 // pred_check_branch
      %82 = sbr.rel (0) target = $region29
    $region28: #{tpu_custom_call.1} parent=1 // pred_region
      _
    $region29: #{tpu_custom_call.1} parent=1 // pred_fallthru
      _
    // Predicated region
    $region30: #{tpu_custom_call.1} parent=1 // pred_check
      _
    $region31: #{tpu_custom_call.1} parent=1 // pred_check_branch
      %84 = sbr.rel (0) target = $region33
    $region32: #{tpu_custom_call.1} parent=1 // pred_region
      _
    $region33: #{tpu_custom_call.1} parent=1 // pred_fallthru
      _
    %85 = vsyncpa [#allocation6], 1

</llo_original>
